<compile_context>
chip_gen: v7x
topology: tpu7x:2x2x1
jax: 0.10.0
libtpu: 0.0.40
codegen_flags: <defaults>
</compile_context>

<pallas_src>
import functools

import jax
import jax.numpy as jnp
from jax.experimental import pallas as pl
from jax.experimental.pallas import tpu as pltpu

D = 6
W = 128
IN_CHANNELS = 2
SKIPS = (3,)

_SUB = 128  # rows per in-kernel sub-chunk (keeps each layer's intermediates vreg-resident)


def _round_up(n, m):
    return ((n + m - 1) // m) * m


def _cdiv(a, b):
    return -(-a // b)


def _plan_tiles(B, tm, sub):
    """Return (tm_eff, n_tiles, sub_eff, n_sub) with tm_eff % sub_eff == 0."""
    if B <= sub:
        tm_eff = _round_up(B, 8)
        return tm_eff, 1, tm_eff, 1
    n_tiles = _cdiv(B, tm)
    if n_tiles > 1 and n_tiles % 2 == 1:
        n_tiles += 1                      # even tile count: both v7x TCs finish together
    rows_per_tile = _cdiv(B, n_tiles)
    tm_eff = _round_up(rows_per_tile, sub)
    return tm_eff, n_tiles, sub, tm_eff // sub


def _make_kernel(n_sub, sub):
    def kernel(x_ref,
               w0, b0,
               w1, b1,
               w2, b2,
               w3h, w3x, b3,
               w4, b4,
               w5, b5,
               o_ref):
        """One batch tile of the full deformation-field MLP.

        x_ref : (TM, 2)    f32 unpadded input
        w0    : (2, 128)   f32 layer-0 weight (VPU rank-2 update)
        w3x   : (2, 128)   f32 skip-layer rows acting on x (VPU rank-2 update)
        wK    : (128, 128) bf16 hidden weights, (in, out)-major (MXU)
        bK    : (1, 128)   f32 biases
        o_ref : (TM, 128)  f32 output of the last layer
        """

        def compute(r0):
            x = x_ref[pl.ds(r0, sub), :].astype(jnp.float32)   # (sub, 2)
            x0 = x[:, 0:1]
            x1 = x[:, 1:2]

            def rank2(acc, w_ref):
                # acc (sub, W) f32;  adds x @ w for the 2 input channels on the VPU.
                w = w_ref[...]                                   # (2, W) f32
                return acc + x0 * w[0:1, :] + x1 * w[1:2, :]

            def lin(h, w_ref, b_ref):
                # bf16 MXU matmul, f32 accumulation, f32 bias add.
                return (jnp.dot(h, w_ref[...], preferred_element_type=jnp.float32)
                        + b_ref[...])

            # layer 1 (i=0): Linear(2, W) + ReLU  -> pure VPU rank-2 update
            h = jnp.maximum(rank2(b0[...], w0), 0.0).astype(jnp.bfloat16)
            # layers 2, 3 (i=1, 2): Linear(W, W) + ReLU
            h = jnp.maximum(lin(h, w1, b1), 0.0).astype(jnp.bfloat16)
            h = jnp.maximum(lin(h, w2, b2), 0.0).astype(jnp.bfloat16)
            # layer 4 (i=3, skip): Linear(W+2, W) + ReLU  ==  h @ W_h + x @ W_x + b
            h = jnp.maximum(rank2(lin(h, w3h, b3), w3x), 0.0).astype(jnp.bfloat16)
            # layers 5, 6 (i=4, 5): Linear(W, W) + ReLU
            h = jnp.maximum(lin(h, w4, b4), 0.0).astype(jnp.bfloat16)
            out = jnp.maximum(lin(h, w5, b5), 0.0)
            o_ref[pl.ds(r0, sub), :] = out.astype(o_ref.dtype)

        if n_sub == 1:
            compute(0)
        else:
            def body(s, carry):
                compute(pl.multiple_of(s * sub, sub))
                return carry
            jax.lax.fori_loop(0, n_sub, body, 0)

    return kernel


def init_params(key):
    """Deterministic synthetic parameters, shapes matching the nn.Module (stored (in, out))."""
    keys = jax.random.split(key, 2 * D)
    params = []
    for i in range(D):
        if i == 0:
            fan_in = IN_CHANNELS
        elif i in SKIPS:
            fan_in = W + IN_CHANNELS
        else:
            fan_in = W
        scale = 1.0 / jnp.sqrt(fan_in)
        w = jax.random.uniform(keys[2 * i], (fan_in, W), jnp.float32, -scale, scale)
        b = jax.random.uniform(keys[2 * i + 1], (W,), jnp.float32, -scale, scale)
        params.append((w, b))
    return params


def reference_forward(params, x):
    """Plain-JAX f32 reference matching the PyTorch forward."""
    out = x
    for i in range(D):
        w, b = params[i]
        if i in SKIPS:
            out = jnp.concatenate([out, x], axis=-1)
        out = jnp.maximum(out @ w + b, 0.0)
    return out


def prepare_params(params):
    """One-time weight prep: bf16 MXU weights, f32 rank-2 weights/biases, skip-weight split."""
    w0, b0 = params[0]
    w1, b1 = params[1]
    w2, b2 = params[2]
    w3, b3 = params[3]
    w4, b4 = params[4]
    w5, b5 = params[5]
    bf16, f32 = jnp.bfloat16, jnp.float32
    return (
        w0.astype(f32), b0.reshape(1, W).astype(f32),
        w1.astype(bf16), b1.reshape(1, W).astype(f32),
        w2.astype(bf16), b2.reshape(1, W).astype(f32),
        w3[:W, :].astype(bf16),            # hidden part of the skip layer (MXU)
        w3[W:, :].astype(f32),             # x part of the skip layer (VPU rank-2)
        b3.reshape(1, W).astype(f32),
        w4.astype(bf16), b4.reshape(1, W).astype(f32),
        w5.astype(bf16), b5.reshape(1, W).astype(f32),
    )


@functools.partial(jax.jit, static_argnames=("tm",))
def _forward(prepped, x, tm):
    B = x.shape[0]
    tm_eff, n_tiles, sub, n_sub = _plan_tiles(B, tm, _SUB)
    B_pad = tm_eff * n_tiles

    x_in = x.astype(jnp.float32)
    if B_pad != B:
        x_in = jnp.zeros((B_pad, IN_CHANNELS), jnp.float32).at[:B].set(x_in)

    x_spec = pl.BlockSpec((tm_eff, IN_CHANNELS), lambda i: (i, 0))
    w_spec = pl.BlockSpec((W, W), lambda i: (0, 0))            # grid-invariant: stays resident
    wx_spec = pl.BlockSpec((IN_CHANNELS, W), lambda i: (0, 0))
    b_spec = pl.BlockSpec((1, W), lambda i: (0, 0))

    in_specs = [
        x_spec,
        wx_spec, b_spec,
        w_spec, b_spec,
        w_spec, b_spec,
        w_spec, wx_spec, b_spec,
        w_spec, b_spec,
        w_spec, b_spec,
    ]

    flops = 2 * B_pad * (5 * W * W + 2 * IN_CHANNELS * W)
    bytes_accessed = (B_pad * IN_CHANNELS * 4 + B_pad * W * 4
                      + 5 * W * W * 2 + 2 * IN_CHANNELS * W * 4 * 2 + D * W * 4)

    out = pl.pallas_call(
        _make_kernel(n_sub, sub),
        out_shape=jax.ShapeDtypeStruct((B_pad, W), jnp.float32),
        grid_spec=pltpu.PrefetchScalarGridSpec(
            num_scalar_prefetch=0,
            grid=(n_tiles,),
            in_specs=in_specs,
            out_specs=pl.BlockSpec((tm_eff, W), lambda i: (i, 0)),
        ),
        compiler_params=pltpu.CompilerParams(
            dimension_semantics=("parallel",),
            # v5e's scoped-VMEM default is 16 MiB; 32 MiB keeps headroom for the big tile on
            # all generations while staying well under v7x's 64 MiB physical VMEM
            # (at tm=2048: x lane-padded 2 MiB + out 2 MiB + weights <1 MiB, double-buffered).
            vmem_limit_bytes=32 * 1024 * 1024,
        ),
        cost_estimate=pl.CostEstimate(
            flops=int(flops), transcendentals=0, bytes_accessed=int(bytes_accessed)),
    )(x_in, *prepped)

    return out[:B]


def deformation_field_pallas(params, x, tm=2048):
    return _forward(prepare_params(params), x, tm=tm)


if __name__ == "__main__":
    key = jax.random.PRNGKey(0)
    pkey, xkey, xkey2 = jax.random.split(key, 3)

    params = init_params(pkey)
    prepped = prepare_params(params)   # weight casts done once, outside the per-call path

    # Small shape consistent with the module's forward: x is (B, in_channels) = (8, 2).
    x_small = jax.random.normal(xkey, (8, IN_CHANNELS), jnp.float32)
    out_small = jax.block_until_ready(_forward(prepped, x_small, tm=2048))
    ref_small = reference_forward(params, x_small)
    assert out_small.shape == (8, W), out_small.shape
    err = float(jnp.max(jnp.abs(out_small - ref_small)))
    assert jnp.allclose(out_small, ref_small, atol=2e-2, rtol=2e-2), err

    # Larger batch: exercises the multi-tile grid and the in-kernel sub-chunk loop.
    x_big = jax.random.normal(xkey2, (2500, IN_CHANNELS), jnp.float32)
    out_big = jax.block_until_ready(_forward(prepped, x_big, tm=2048))
    ref_big = reference_forward(params, x_big)
    err_big = float(jnp.max(jnp.abs(out_big - ref_big)))
    assert out_big.shape == (2500, W), out_big.shape
    assert jnp.allclose(out_big, ref_big, atol=2e-2, rtol=2e-2), err_big

    print("KERNEL_OK")
</pallas_src>

<mosaic_0001>
module attributes {stable_mosaic.version = 11 : i64} {
  func.func @kernel(%arg0: i32, %arg1: memref<8x2xf32, #tpu.memory_space<vmem>>, %arg2: memref<2x128xf32, #tpu.memory_space<vmem>>, %arg3: memref<1x128xf32, #tpu.memory_space<vmem>>, %arg4: memref<128x128xbf16, #tpu.memory_space<vmem>>, %arg5: memref<1x128xf32, #tpu.memory_space<vmem>>, %arg6: memref<128x128xbf16, #tpu.memory_space<vmem>>, %arg7: memref<1x128xf32, #tpu.memory_space<vmem>>, %arg8: memref<128x128xbf16, #tpu.memory_space<vmem>>, %arg9: memref<2x128xf32, #tpu.memory_space<vmem>>, %arg10: memref<1x128xf32, #tpu.memory_space<vmem>>, %arg11: memref<128x128xbf16, #tpu.memory_space<vmem>>, %arg12: memref<1x128xf32, #tpu.memory_space<vmem>>, %arg13: memref<128x128xbf16, #tpu.memory_space<vmem>>, %arg14: memref<1x128xf32, #tpu.memory_space<vmem>>, %arg15: memref<8x128xf32, #tpu.memory_space<vmem>>) attributes {dimension_semantics = [#tpu.dimension_semantics<parallel>], iteration_bounds = array<i64: 1>, scalar_prefetch = 0 : i64, scratch_operands = 0 : i64, tpu.core_type = #tpu.core_type<tc>, window_params = [{transform_indices = @transform_0, window_bounds = array<i64: 8, 2>}, {pipeline_mode = #tpu.pipeline_mode<synchronous>, transform_indices = @transform_1, window_bounds = array<i64: 2, 128>}, {pipeline_mode = #tpu.pipeline_mode<synchronous>, transform_indices = @transform_2, window_bounds = array<i64: 1, 128>}, {pipeline_mode = #tpu.pipeline_mode<synchronous>, transform_indices = @transform_3, window_bounds = array<i64: 128, 128>}, {pipeline_mode = #tpu.pipeline_mode<synchronous>, transform_indices = @transform_4, window_bounds = array<i64: 1, 128>}, {pipeline_mode = #tpu.pipeline_mode<synchronous>, transform_indices = @transform_5, window_bounds = array<i64: 128, 128>}, {pipeline_mode = #tpu.pipeline_mode<synchronous>, transform_indices = @transform_6, window_bounds = array<i64: 1, 128>}, {pipeline_mode = #tpu.pipeline_mode<synchronous>, transform_indices = @transform_7, window_bounds = array<i64: 128, 128>}, {pipeline_mode = #tpu.pipeline_mode<synchronous>, transform_indices = @transform_8, window_bounds = array<i64: 2, 128>}, {pipeline_mode = #tpu.pipeline_mode<synchronous>, transform_indices = @transform_9, window_bounds = array<i64: 1, 128>}, {pipeline_mode = #tpu.pipeline_mode<synchronous>, transform_indices = @transform_10, window_bounds = array<i64: 128, 128>}, {pipeline_mode = #tpu.pipeline_mode<synchronous>, transform_indices = @transform_11, window_bounds = array<i64: 1, 128>}, {pipeline_mode = #tpu.pipeline_mode<synchronous>, transform_indices = @transform_12, window_bounds = array<i64: 128, 128>}, {pipeline_mode = #tpu.pipeline_mode<synchronous>, transform_indices = @transform_13, window_bounds = array<i64: 1, 128>}, {transform_indices = @transform_14, window_bounds = array<i64: 8, 128>}]} {
    %c0 = arith.constant 0 : index
    %c0_0 = arith.constant 0 : index
    %0 = vector.load %arg1[%c0, %c0_0] : memref<8x2xf32, #tpu.memory_space<vmem>>, vector<8x2xf32>
    %1 = vector.extract_strided_slice %0 {offsets = [0, 0], sizes = [8, 1], strides = [1, 1]} : vector<8x2xf32> to vector<8x1xf32>
    %2 = vector.extract_strided_slice %0 {offsets = [0, 1], sizes = [8, 1], strides = [1, 1]} : vector<8x2xf32> to vector<8x1xf32>
    %c0_1 = arith.constant 0 : index
    %c0_2 = arith.constant 0 : index
    %3 = vector.load %arg3[%c0_1, %c0_2] : memref<1x128xf32, #tpu.memory_space<vmem>>, vector<1x128xf32>
    %c0_3 = arith.constant 0 : index
    %c0_4 = arith.constant 0 : index
    %4 = vector.load %arg2[%c0_3, %c0_4] : memref<2x128xf32, #tpu.memory_space<vmem>>, vector<2x128xf32>
    %5 = vector.extract_strided_slice %4 {offsets = [0, 0], sizes = [1, 128], strides = [1, 1]} : vector<2x128xf32> to vector<1x128xf32>
    %6 = vector.broadcast %1 : vector<8x1xf32> to vector<8x128xf32>
    %7 = vector.broadcast %5 : vector<1x128xf32> to vector<8x128xf32>
    %8 = arith.mulf %6, %7 : vector<8x128xf32>
    %9 = vector.broadcast %3 : vector<1x128xf32> to vector<8x128xf32>
    %10 = arith.addf %9, %8 : vector<8x128xf32>
    %11 = vector.extract_strided_slice %4 {offsets = [1, 0], sizes = [1, 128], strides = [1, 1]} : vector<2x128xf32> to vector<1x128xf32>
    %12 = vector.broadcast %2 : vector<8x1xf32> to vector<8x128xf32>
    %13 = vector.broadcast %11 : vector<1x128xf32> to vector<8x128xf32>
    %14 = arith.mulf %12, %13 : vector<8x128xf32>
    %15 = arith.addf %10, %14 : vector<8x128xf32>
    %cst = arith.constant 0.000000e+00 : f32
    %16 = vector.broadcast %cst : f32 to vector<8x128xf32>
    %17 = arith.maximumf %15, %16 : vector<8x128xf32>
    %18 = arith.truncf %17 : vector<8x128xf32> to vector<8x128xbf16>
    %c0_5 = arith.constant 0 : index
    %c0_6 = arith.constant 0 : index
    %19 = vector.load %arg4[%c0_5, %c0_6] : memref<128x128xbf16, #tpu.memory_space<vmem>>, vector<128x128xbf16>
    %cst_7 = arith.constant dense<0.000000e+00> : vector<8x128xf32>
    %20 = tpu.matmul %18, %19, %cst_7 {dimension_numbers = #tpu.dot_dimension_numbers<[1], [0], [0], [1], [0, 0, 1, 1], [], []>} : vector<8x128xbf16>, vector<128x128xbf16>, vector<8x128xf32> -> vector<8x128xf32>
    %c0_8 = arith.constant 0 : index
    %c0_9 = arith.constant 0 : index
    %21 = vector.load %arg5[%c0_8, %c0_9] : memref<1x128xf32, #tpu.memory_space<vmem>>, vector<1x128xf32>
    %22 = vector.broadcast %21 : vector<1x128xf32> to vector<8x128xf32>
    %23 = arith.addf %20, %22 : vector<8x128xf32>
    %cst_10 = arith.constant 0.000000e+00 : f32
    %24 = vector.broadcast %cst_10 : f32 to vector<8x128xf32>
    %25 = arith.maximumf %23, %24 : vector<8x128xf32>
    %26 = arith.truncf %25 : vector<8x128xf32> to vector<8x128xbf16>
    %c0_11 = arith.constant 0 : index
    %c0_12 = arith.constant 0 : index
    %27 = vector.load %arg6[%c0_11, %c0_12] : memref<128x128xbf16, #tpu.memory_space<vmem>>, vector<128x128xbf16>
    %cst_13 = arith.constant dense<0.000000e+00> : vector<8x128xf32>
    %28 = tpu.matmul %26, %27, %cst_13 {dimension_numbers = #tpu.dot_dimension_numbers<[1], [0], [0], [1], [0, 0, 1, 1], [], []>} : vector<8x128xbf16>, vector<128x128xbf16>, vector<8x128xf32> -> vector<8x128xf32>
    %c0_14 = arith.constant 0 : index
    %c0_15 = arith.constant 0 : index
    %29 = vector.load %arg7[%c0_14, %c0_15] : memref<1x128xf32, #tpu.memory_space<vmem>>, vector<1x128xf32>
    %30 = vector.broadcast %29 : vector<1x128xf32> to vector<8x128xf32>
    %31 = arith.addf %28, %30 : vector<8x128xf32>
    %cst_16 = arith.constant 0.000000e+00 : f32
    %32 = vector.broadcast %cst_16 : f32 to vector<8x128xf32>
    %33 = arith.maximumf %31, %32 : vector<8x128xf32>
    %34 = arith.truncf %33 : vector<8x128xf32> to vector<8x128xbf16>
    %c0_17 = arith.constant 0 : index
    %c0_18 = arith.constant 0 : index
    %35 = vector.load %arg8[%c0_17, %c0_18] : memref<128x128xbf16, #tpu.memory_space<vmem>>, vector<128x128xbf16>
    %cst_19 = arith.constant dense<0.000000e+00> : vector<8x128xf32>
    %36 = tpu.matmul %34, %35, %cst_19 {dimension_numbers = #tpu.dot_dimension_numbers<[1], [0], [0], [1], [0, 0, 1, 1], [], []>} : vector<8x128xbf16>, vector<128x128xbf16>, vector<8x128xf32> -> vector<8x128xf32>
    %c0_20 = arith.constant 0 : index
    %c0_21 = arith.constant 0 : index
    %37 = vector.load %arg10[%c0_20, %c0_21] : memref<1x128xf32, #tpu.memory_space<vmem>>, vector<1x128xf32>
    %38 = vector.broadcast %37 : vector<1x128xf32> to vector<8x128xf32>
    %39 = arith.addf %36, %38 : vector<8x128xf32>
    %c0_22 = arith.constant 0 : index
    %c0_23 = arith.constant 0 : index
    %40 = vector.load %arg9[%c0_22, %c0_23] : memref<2x128xf32, #tpu.memory_space<vmem>>, vector<2x128xf32>
    %41 = vector.extract_strided_slice %40 {offsets = [0, 0], sizes = [1, 128], strides = [1, 1]} : vector<2x128xf32> to vector<1x128xf32>
    %42 = vector.broadcast %1 : vector<8x1xf32> to vector<8x128xf32>
    %43 = vector.broadcast %41 : vector<1x128xf32> to vector<8x128xf32>
    %44 = arith.mulf %42, %43 : vector<8x128xf32>
    %45 = arith.addf %39, %44 : vector<8x128xf32>
    %46 = vector.extract_strided_slice %40 {offsets = [1, 0], sizes = [1, 128], strides = [1, 1]} : vector<2x128xf32> to vector<1x128xf32>
    %47 = vector.broadcast %2 : vector<8x1xf32> to vector<8x128xf32>
    %48 = vector.broadcast %46 : vector<1x128xf32> to vector<8x128xf32>
    %49 = arith.mulf %47, %48 : vector<8x128xf32>
    %50 = arith.addf %45, %49 : vector<8x128xf32>
    %cst_24 = arith.constant 0.000000e+00 : f32
    %51 = vector.broadcast %cst_24 : f32 to vector<8x128xf32>
    %52 = arith.maximumf %50, %51 : vector<8x128xf32>
    %53 = arith.truncf %52 : vector<8x128xf32> to vector<8x128xbf16>
    %c0_25 = arith.constant 0 : index
    %c0_26 = arith.constant 0 : index
    %54 = vector.load %arg11[%c0_25, %c0_26] : memref<128x128xbf16, #tpu.memory_space<vmem>>, vector<128x128xbf16>
    %cst_27 = arith.constant dense<0.000000e+00> : vector<8x128xf32>
    %55 = tpu.matmul %53, %54, %cst_27 {dimension_numbers = #tpu.dot_dimension_numbers<[1], [0], [0], [1], [0, 0, 1, 1], [], []>} : vector<8x128xbf16>, vector<128x128xbf16>, vector<8x128xf32> -> vector<8x128xf32>
    %c0_28 = arith.constant 0 : index
    %c0_29 = arith.constant 0 : index
    %56 = vector.load %arg12[%c0_28, %c0_29] : memref<1x128xf32, #tpu.memory_space<vmem>>, vector<1x128xf32>
    %57 = vector.broadcast %56 : vector<1x128xf32> to vector<8x128xf32>
    %58 = arith.addf %55, %57 : vector<8x128xf32>
    %cst_30 = arith.constant 0.000000e+00 : f32
    %59 = vector.broadcast %cst_30 : f32 to vector<8x128xf32>
    %60 = arith.maximumf %58, %59 : vector<8x128xf32>
    %61 = arith.truncf %60 : vector<8x128xf32> to vector<8x128xbf16>
    %c0_31 = arith.constant 0 : index
    %c0_32 = arith.constant 0 : index
    %62 = vector.load %arg13[%c0_31, %c0_32] : memref<128x128xbf16, #tpu.memory_space<vmem>>, vector<128x128xbf16>
    %cst_33 = arith.constant dense<0.000000e+00> : vector<8x128xf32>
    %63 = tpu.matmul %61, %62, %cst_33 {dimension_numbers = #tpu.dot_dimension_numbers<[1], [0], [0], [1], [0, 0, 1, 1], [], []>} : vector<8x128xbf16>, vector<128x128xbf16>, vector<8x128xf32> -> vector<8x128xf32>
    %c0_34 = arith.constant 0 : index
    %c0_35 = arith.constant 0 : index
    %64 = vector.load %arg14[%c0_34, %c0_35] : memref<1x128xf32, #tpu.memory_space<vmem>>, vector<1x128xf32>
    %65 = vector.broadcast %64 : vector<1x128xf32> to vector<8x128xf32>
    %66 = arith.addf %63, %65 : vector<8x128xf32>
    %cst_36 = arith.constant 0.000000e+00 : f32
    %67 = vector.broadcast %cst_36 : f32 to vector<8x128xf32>
    %68 = arith.maximumf %66, %67 : vector<8x128xf32>
    %c0_37 = arith.constant 0 : index
    %c0_38 = arith.constant 0 : index
    %69 = vector.load %arg15[%c0_37, %c0_38] : memref<8x128xf32, #tpu.memory_space<vmem>>, vector<8x128xf32>
    tpu.vector_store %arg15[%c0_37, %c0_38], %68 {strides = array<i32>} : memref<8x128xf32, #tpu.memory_space<vmem>>, vector<8x128xf32>,
    return
  }
  func.func @transform_0(%arg0: i32) -> (i32, i32) {
    %c0_i32 = arith.constant 0 : i32
    %c0_i32_0 = arith.constant 0 : i32
    return %arg0, %c0_i32 : i32, i32
  }
  func.func @transform_1(%arg0: i32) -> (i32, i32) {
    %c0_i32 = arith.constant 0 : i32
    %c0_i32_0 = arith.constant 0 : i32
    %c0_i32_1 = arith.constant 0 : i32
    return %c0_i32, %c0_i32_0 : i32, i32
  }
  func.func @transform_2(%arg0: i32) -> (i32, i32) {
    %c0_i32 = arith.constant 0 : i32
    %c0_i32_0 = arith.constant 0 : i32
    %c0_i32_1 = arith.constant 0 : i32
    return %c0_i32, %c0_i32_0 : i32, i32
  }
  func.func @transform_3(%arg0: i32) -> (i32, i32) {
    %c0_i32 = arith.constant 0 : i32
    %c0_i32_0 = arith.constant 0 : i32
    %c0_i32_1 = arith.constant 0 : i32
    return %c0_i32, %c0_i32_0 : i32, i32
  }
  func.func @transform_4(%arg0: i32) -> (i32, i32) {
    %c0_i32 = arith.constant 0 : i32
    %c0_i32_0 = arith.constant 0 : i32
    %c0_i32_1 = arith.constant 0 : i32
    return %c0_i32, %c0_i32_0 : i32, i32
  }
  func.func @transform_5(%arg0: i32) -> (i32, i32) {
    %c0_i32 = arith.constant 0 : i32
    %c0_i32_0 = arith.constant 0 : i32
    %c0_i32_1 = arith.constant 0 : i32
    return %c0_i32, %c0_i32_0 : i32, i32
  }
  func.func @transform_6(%arg0: i32) -> (i32, i32) {
    %c0_i32 = arith.constant 0 : i32
    %c0_i32_0 = arith.constant 0 : i32
    %c0_i32_1 = arith.constant 0 : i32
    return %c0_i32, %c0_i32_0 : i32, i32
  }
  func.func @transform_7(%arg0: i32) -> (i32, i32) {
    %c0_i32 = arith.constant 0 : i32
    %c0_i32_0 = arith.constant 0 : i32
    %c0_i32_1 = arith.constant 0 : i32
    return %c0_i32, %c0_i32_0 : i32, i32
  }
  func.func @transform_8(%arg0: i32) -> (i32, i32) {
    %c0_i32 = arith.constant 0 : i32
    %c0_i32_0 = arith.constant 0 : i32
    %c0_i32_1 = arith.constant 0 : i32
    return %c0_i32, %c0_i32_0 : i32, i32
  }
  func.func @transform_9(%arg0: i32) -> (i32, i32) {
    %c0_i32 = arith.constant 0 : i32
    %c0_i32_0 = arith.constant 0 : i32
    %c0_i32_1 = arith.constant 0 : i32
    return %c0_i32, %c0_i32_0 : i32, i32
  }
  func.func @transform_10(%arg0: i32) -> (i32, i32) {
    %c0_i32 = arith.constant 0 : i32
    %c0_i32_0 = arith.constant 0 : i32
    %c0_i32_1 = arith.constant 0 : i32
    return %c0_i32, %c0_i32_0 : i32, i32
  }
  func.func @transform_11(%arg0: i32) -> (i32, i32) {
    %c0_i32 = arith.constant 0 : i32
    %c0_i32_0 = arith.constant 0 : i32
    %c0_i32_1 = arith.constant 0 : i32
    return %c0_i32, %c0_i32_0 : i32, i32
  }
  func.func @transform_12(%arg0: i32) -> (i32, i32) {
    %c0_i32 = arith.constant 0 : i32
    %c0_i32_0 = arith.constant 0 : i32
    %c0_i32_1 = arith.constant 0 : i32
    return %c0_i32, %c0_i32_0 : i32, i32
  }
  func.func @transform_13(%arg0: i32) -> (i32, i32) {
    %c0_i32 = arith.constant 0 : i32
    %c0_i32_0 = arith.constant 0 : i32
    %c0_i32_1 = arith.constant 0 : i32
    return %c0_i32, %c0_i32_0 : i32, i32
  }
  func.func @transform_14(%arg0: i32) -> (i32, i32) {
    %c0_i32 = arith.constant 0 : i32
    %c0_i32_0 = arith.constant 0 : i32
    return %arg0, %c0_i32 : i32, i32
  }
}

</mosaic_0001>

<llo_original>
// kernel: _forward.1
$region0: #{_forward.1}
  #allocation0 [shape = 'u32[]', space=smem, size = 0x4, offset = 0x4, fixed_abs, tag = 'smem constant byte address 0x4 - core index']
  #allocation1 [shape = 'u32[144,128]{1,0:T(1,128)}', space=vmem, size = 0x12000, scoped, tag = 'internal scratch']
  %s0 = inlined_call_operand.vmem [shape: f32[8,2], index: 0, kind: input, shape index: {}]
  %s1 = inlined_call_operand.vmem [shape: f32[2,128], index: 1, kind: input, shape index: {}]
  %s2 = inlined_call_operand.vmem [shape: f32[1,128], index: 2, kind: input, shape index: {}]
  %s3 = inlined_call_operand.hbm [shape: bf16[128,128], index: 3, kind: input, shape index: {}]
  %s4 = inlined_call_operand.vmem [shape: f32[1,128], index: 4, kind: input, shape index: {}]
  %s5 = inlined_call_operand.hbm [shape: bf16[128,128], index: 5, kind: input, shape index: {}]
  %s6 = inlined_call_operand.vmem [shape: f32[1,128], index: 6, kind: input, shape index: {}]
  %s7 = inlined_call_operand.hbm [shape: bf16[128,128], index: 7, kind: input, shape index: {}]
  %s8 = inlined_call_operand.vmem [shape: f32[2,128], index: 8, kind: input, shape index: {}]
  %s9 = inlined_call_operand.vmem [shape: f32[1,128], index: 9, kind: input, shape index: {}]
  %s10 = inlined_call_operand.hbm [shape: bf16[128,128], index: 10, kind: input, shape index: {}]
  %s11 = inlined_call_operand.vmem [shape: f32[1,128], index: 11, kind: input, shape index: {}]
  %s12 = inlined_call_operand.hbm [shape: bf16[128,128], index: 12, kind: input, shape index: {}]
  %s13 = inlined_call_operand.vmem [shape: f32[1,128], index: 13, kind: input, shape index: {}]
  %s14 = inlined_call_operand.hbm [shape: f32[8,128], index: 14, kind: output, shape index: {}]
  %s15 = sld [smem:[#allocation0]]
  $region86: #{_forward.1} parent=0
    _
  %s17 = ssub.s32 1, %s15
  %s18 = scalar_select 0, %s17, %s15
  $region1: #{_forward.1} parent=0
    #allocation2 [shape = 'u8[32768]{0}', space=vmem, size = 0x8000, scoped, tag = 'input window, operand 3, single buffered']
    #allocation3 [shape = 's32[1]{0}', space=sflag, size = 0x4, scoped, tag = 'scoped memory for _forward.1']
    #allocation4 [shape = 's32[1]{0}', space=sflag, size = 0x4, scoped, tag = 'scoped memory for _forward.1']
    #allocation5 [shape = 'u8[32768]{0}', space=vmem, size = 0x8000, scoped, tag = 'input window, operand 5, single buffered']
    #allocation6 [shape = 's32[1]{0}', space=sflag, size = 0x4, scoped, tag = 'scoped memory for _forward.1']
    #allocation7 [shape = 'u8[32768]{0}', space=vmem, size = 0x8000, scoped, tag = 'input window, operand 7, single buffered']
    #allocation8 [shape = 'u8[32768]{0}', space=vmem, size = 0x8000, scoped, tag = 'input window, operand 10, single buffered']
    #allocation9 [shape = 's32[1]{0}', space=sflag, size = 0x4, scoped, tag = 'scoped memory for _forward.1']
    #allocation10 [shape = 'u8[32768]{0}', space=vmem, size = 0x8000, scoped, tag = 'input window, operand 12, single buffered']
    #allocation11 [shape = 'u8[4096]{0}', space=vmem, size = 0x1000, scoped, tag = 'output window, operand 0, single buffered']
    %19 = vsyncpa [#allocation3], 0
    %20 = vsyncpa [#allocation6], 0
    %21 = vsyncpa [#allocation9], 0
    %22 = vsyncpa [#allocation4], 0
    // Predicated region
    $region2: #{_forward.1} parent=1 // pred_check
      _
    $region3: #{_forward.1} parent=1 // pred_check_branch
      %24 = sbr.rel (0) target = $region5
    $region4: #{_forward.1} parent=1 // pred_region
      _
    $region5: #{_forward.1} parent=1 // pred_fallthru
      _
    // Predicated region
    $region6: #{_forward.1} parent=1 // pred_check
      _
    $region7: #{_forward.1} parent=1 // pred_check_branch
      %26 = sbr.rel (0) target = $region9
    $region8: #{_forward.1} parent=1 // pred_region
      _
    $region9: #{_forward.1} parent=1 // pred_fallthru
      _
    // Predicated region
    $region10: #{_forward.1} parent=1 // pred_check
      _
    $region11: #{_forward.1} parent=1 // pred_check_branch
      %28 = sbr.rel (0) target = $region13
    $region12: #{_forward.1} parent=1 // pred_region
      _
    $region13: #{_forward.1} parent=1 // pred_fallthru
      _
    // Predicated region
    $region14: #{_forward.1} parent=1 // pred_check
      _
    $region15: #{_forward.1} parent=1 // pred_check_branch
      %30 = sbr.rel (0) target = $region17
    $region16: #{_forward.1} parent=1 // pred_region
      %s32 = ssub.s32 1024, 1024
      %33 = vsyncadd [#allocation3], %s32
      %s34 = sshll.u32 [#allocation2], 4
      %s35 = int_to_ptr.vmem [resolvable:$true] %s34
      %40 = dma.hbm_to_vmem [thread:$0]  %s3, 1024, %s35, [#allocation3], 64, 64, 4
    $region17: #{_forward.1} parent=1 // pred_fallthru
      _
    // Predicated region
    $region18: #{_forward.1} parent=1 // pred_check
      _
    $region19: #{_forward.1} parent=1 // pred_check_branch
      %42 = sbr.rel (0) target = $region21
    $region20: #{_forward.1} parent=1 // pred_region
      _
    $region21: #{_forward.1} parent=1 // pred_fallthru
      _
    // Predicated region
    $region22: #{_forward.1} parent=1 // pred_check
      _
    $region23: #{_forward.1} parent=1 // pred_check_branch
      %44 = sbr.rel (0) target = $region25
    $region24: #{_forward.1} parent=1 // pred_region
      %s46 = ssub.s32 1024, 1024
      %47 = vsyncadd [#allocation6], %s46
      %s48 = sshll.u32 [#allocation5], 4
      %s49 = int_to_ptr.vmem [resolvable:$true] %s48
      %54 = dma.hbm_to_vmem [thread:$0]  %s5, 1024, %s49, [#allocation6], 64, 64, 4
    $region25: #{_forward.1} parent=1 // pred_fallthru
      _
    // Predicated region
    $region26: #{_forward.1} parent=1 // pred_check
      _
    $region27: #{_forward.1} parent=1 // pred_check_branch
      %56 = sbr.rel (0) target = $region29
    $region28: #{_forward.1} parent=1 // pred_region
      _
    $region29: #{_forward.1} parent=1 // pred_fallthru
      _
    // Predicated region
    $region30: #{_forward.1} parent=1 // pred_check
      _
    $region31: #{_forward.1} parent=1 // pred_check_branch
      %58 = sbr.rel (0) target = $region33
    $region32: #{_forward.1} parent=1 // pred_region
      %s60 = ssub.s32 1024, 1024
      %61 = vsyncadd [#allocation6], %s60
      %s62 = sshll.u32 [#allocation7], 4
      %s63 = int_to_ptr.vmem [resolvable:$true] %s62
      %68 = dma.hbm_to_vmem [thread:$0]  %s7, 1024, %s63, [#allocation6], 64, 64, 4
    $region33: #{_forward.1} parent=1 // pred_fallthru
      _
    // Predicated region
    $region34: #{_forward.1} parent=1 // pred_check
      _
    $region35: #{_forward.1} parent=1 // pred_check_branch
      %70 = sbr.rel (0) target = $region37
    $region36: #{_forward.1} parent=1 // pred_region
      _
    $region37: #{_forward.1} parent=1 // pred_fallthru
      _
    // Predicated region
    $region38: #{_forward.1} parent=1 // pred_check
      _
    $region39: #{_forward.1} parent=1 // pred_check_branch
      %72 = sbr.rel (0) target = $region41
    $region40: #{_forward.1} parent=1 // pred_region
      _
    $region41: #{_forward.1} parent=1 // pred_fallthru
      _
    // Predicated region
    $region42: #{_forward.1} parent=1 // pred_check
      _
    $region43: #{_forward.1} parent=1 // pred_check_branch
      %74 = sbr.rel (0) target = $region45
    $region44: #{_forward.1} parent=1 // pred_region
      %s76 = ssub.s32 1024, 1024
      %77 = vsyncadd [#allocation9], %s76
      %s78 = sshll.u32 [#allocation8], 4
      %s79 = int_to_ptr.vmem [resolvable:$true] %s78
      %84 = dma.hbm_to_vmem [thread:$0]  %s10, 1024, %s79, [#allocation9], 64, 64, 4
    $region45: #{_forward.1} parent=1 // pred_fallthru
      _
    // Predicated region
    $region46: #{_forward.1} parent=1 // pred_check
      _
    $region47: #{_forward.1} parent=1 // pred_check_branch
      %86 = sbr.rel (0) target = $region49
    $region48: #{_forward.1} parent=1 // pred_region
      _
    $region49: #{_forward.1} parent=1 // pred_fallthru
      _
    // Predicated region
    $region50: #{_forward.1} parent=1 // pred_check
      _
    $region51: #{_forward.1} parent=1 // pred_check_branch
      %88 = sbr.rel (0) target = $region53
    $region52: #{_forward.1} parent=1 // pred_region
      %s90 = ssub.s32 1024, 1024
      %91 = vsyncadd [#allocation9], %s90
      %s92 = sshll.u32 [#allocation10], 4
      %s93 = int_to_ptr.vmem [resolvable:$true] %s92
      %98 = dma.hbm_to_vmem [thread:$0]  %s12, 1024, %s93, [#allocation9], 64, 64, 4
    $region53: #{_forward.1} parent=1 // pred_fallthru
      _
    // Predicated region
    $region54: #{_forward.1} parent=1 // pred_check
      _
    $region55: #{_forward.1} parent=1 // pred_check_branch
      %100 = sbr.rel (0) target = $region57
    $region56: #{_forward.1} parent=1 // pred_region
      _
    $region57: #{_forward.1} parent=1 // pred_fallthru
      _
    // Predicated region
    $region58: #{_forward.1} parent=1 // pred_check
      _
    $region59: #{_forward.1} parent=1 // pred_check_branch
      %102 = sbr.rel (0) target = $region61
    $region60: #{_forward.1} parent=1 // pred_region
      %103 = dma.done [#allocation3], 1024
    $region61: #{_forward.1} parent=1 // pred_fallthru
      _
    // Predicated region
    $region62: #{_forward.1} parent=1 // pred_check
      _
    $region63: #{_forward.1} parent=1 // pred_check_branch
      %105 = sbr.rel (0) target = $region65
    $region64: #{_forward.1} parent=1 // pred_region
      %106 = dma.done [#allocation6], 1024
    $region65: #{_forward.1} parent=1 // pred_fallthru
      _
    // Predicated region
    $region66: #{_forward.1} parent=1 // pred_check
      _
    $region67: #{_forward.1} parent=1 // pred_check_branch
      %108 = sbr.rel (0) target = $region69
    $region68: #{_forward.1} parent=1 // pred_region
      %109 = dma.done [#allocation6], 1024
    $region69: #{_forward.1} parent=1 // pred_fallthru
      _
    // Predicated region
    $region70: #{_forward.1} parent=1 // pred_check
      _
    $region71: #{_forward.1} parent=1 // pred_check_branch
      %111 = sbr.rel (0) target = $region73
    $region72: #{_forward.1} parent=1 // pred_region
      %112 = dma.done [#allocation9], 1024
    $region73: #{_forward.1} parent=1 // pred_fallthru
      _
    // Predicated region
    $region74: #{_forward.1} parent=1 // pred_check
      _
    $region75: #{_forward.1} parent=1 // pred_check_branch
      %114 = sbr.rel (0) target = $region77
    $region76: #{_forward.1} parent=1 // pred_region
      %115 = dma.done [#allocation9], 1024
    $region77: #{_forward.1} parent=1 // pred_fallthru
      _
    %v117 = vld [vmem:[%s0] sm:$0xff]
    %v118 = vld [vmem:[%s2] sm:$0x1]
    %v119 = vld [vmem:[%s1] sm:$0x3]
    %121 = vset.pattern.permute.xlu0 0
    %122 = vperm.xlu0 %121, %v117
    %v123 = vpop.permute.xlu0 %122
    %v125 = vlaneseq
    %v126 = vshrl.u32 %v125, 7
    %v127 = vsub.s32 0, %v126
    %v128 = vrot.slane %v119, %v127
    %v129 = vmul.f32 %v123, %v128
    %v131 = vlaneseq
    %v132 = vshrl.u32 %v131, 7
    %v133 = vsub.s32 0, %v132
    %v134 = vrot.slane %v118, %v133
    %v136 = vadd.f32 %v134, %v129
    %137 = vset.pattern.permute.xlu0 1
    %138 = vperm.xlu0 %137, %v117
    %v139 = vpop.permute.xlu0 %138
    %v141 = vlaneseq
    %v142 = vshrl.u32 %v141, 7
    %v143 = vsub.s32 1, %v142
    %v144 = vrot.slane %v119, %v143
    %v145 = vmul.f32 %v139, %v144
    %v146 = vadd.f32 %v136, %v145
    %v147 = vmax.f32 %v146, 0.0
    %v148 = vpack.c.bf16 %v147, %v147
    %v149 = vld [vmem:[#allocation2] sm:$0xf]
    %v150 = vld [vmem:[#allocation2 + $0x4] sm:$0xf]
    %v151 = vld [vmem:[#allocation2 + $0x8] sm:$0xf]
    %v152 = vld [vmem:[#allocation2 + $0xc] sm:$0xf]
    %v153 = vld [vmem:[#allocation2 + $0x10] sm:$0xf]
    %v154 = vld [vmem:[#allocation2 + $0x14] sm:$0xf]
    %v155 = vld [vmem:[#allocation2 + $0x18] sm:$0xf]
    %v156 = vld [vmem:[#allocation2 + $0x1c] sm:$0xf]
    %v157 = vld [vmem:[#allocation2 + $0x20] sm:$0xf]
    %v158 = vld [vmem:[#allocation2 + $0x24] sm:$0xf]
    %v159 = vld [vmem:[#allocation2 + $0x28] sm:$0xf]
    %v160 = vld [vmem:[#allocation2 + $0x2c] sm:$0xf]
    %v161 = vld [vmem:[#allocation2 + $0x30] sm:$0xf]
    %v162 = vld [vmem:[#allocation2 + $0x34] sm:$0xf]
    %v163 = vld [vmem:[#allocation2 + $0x38] sm:$0xf]
    %v164 = vld [vmem:[#allocation2 + $0x3c] sm:$0xf]
    %v165 = vld [vmem:[%s4] sm:$0x1]
    %v167 = vlaneseq
    %v168 = vshrl.u32 %v167, 7
    %v169 = vsub.s32 0, %v168
    %v170 = vrot.slane %v165, %v169
    %v188 = vunpack.c.l.b16 %v149
    %v189 = vunpack.c.l.b16 %v150
    %v190 = vunpack.c.l.b16 %v151
    %v191 = vunpack.c.l.b16 %v152
    %v192 = vunpack.c.l.b16 %v153
    %v193 = vunpack.c.l.b16 %v154
    %v194 = vunpack.c.l.b16 %v155
    %v195 = vunpack.c.l.b16 %v156
    %v196 = vunpack.c.l.b16 %v157
    %v197 = vunpack.c.l.b16 %v158
    %v198 = vunpack.c.l.b16 %v159
    %v199 = vunpack.c.l.b16 %v160
    %v200 = vunpack.c.l.b16 %v161
    %v201 = vunpack.c.l.b16 %v162
    %v202 = vunpack.c.l.b16 %v163
    %v203 = vunpack.c.l.b16 %v164
    %v204 = vpack.c.b16 %v189, %v188
    %v205 = vpack.c.b16 %v191, %v190
    %v206 = vpack.c.b16 %v193, %v192
    %v207 = vpack.c.b16 %v195, %v194
    %v208 = vpack.c.b16 %v197, %v196
    %v209 = vpack.c.b16 %v199, %v198
    %v210 = vpack.c.b16 %v201, %v200
    %v211 = vpack.c.b16 %v203, %v202
    %220 = vmatprep.subr.bf16.mxu0 0
    %221 = vmatpush1.bf16.msra.mxu0 %v204
    %222 = vmatprep.subr.bf16.mxu0 0
    %223 = vmatpush1.bf16.msra.mxu0 %v205
    %224 = vmatprep.subr.bf16.mxu0 0
    %225 = vmatpush1.bf16.msra.mxu0 %v206
    %226 = vmatprep.subr.bf16.mxu0 0
    %227 = vmatpush1.bf16.msra.mxu0 %v207
    %228 = vmatprep.subr.bf16.mxu0 0
    %229 = vmatpush1.bf16.msra.mxu0 %v208
    %230 = vmatprep.subr.bf16.mxu0 0
    %231 = vmatpush1.bf16.msra.mxu0 %v209
    %232 = vmatprep.subr.bf16.mxu0 0
    %233 = vmatpush1.bf16.msra.mxu0 %v210
    %234 = vmatprep.subr.bf16.mxu0 0
    %235 = vmatpush1.bf16.msra.mxu0 %v211
    %236 = vmatprep.subr.bf16.mxu0 0
    %237 = vmatpush1.bf16.msra.mxu0 0
    %238 = vmatprep.subr.bf16.mxu0 0
    %239 = vmatpush1.bf16.msra.mxu0 0
    %240 = vmatprep.subr.bf16.mxu0 0
    %241 = vmatpush1.bf16.msra.mxu0 0
    %242 = vmatprep.subr.bf16.mxu0 0
    %243 = vmatpush1.bf16.msra.mxu0 0
    %244 = vmatprep.subr.bf16.mxu0 0
    %245 = vmatpush1.bf16.msra.mxu0 0
    %246 = vmatprep.subr.bf16.mxu0 0
    %247 = vmatpush1.bf16.msra.mxu0 0
    %248 = vmatprep.subr.bf16.mxu0 0
    %249 = vmatpush1.bf16.msra.mxu0 0
    %250 = vmatprep.subr.bf16.mxu0 0
    %251 = vmatpush1.bf16.msra.mxu0 0
    %252 = vmatprep.mubr.bf16.mxu0 0
    %253 = vmatmul.mubr.bf16.gmra.mrb[0].mxu0 %v148
    %v254 = vpop.f32.mrb[0].mxu0
    %v255 = vadd.f32 %v170, %v254
    %v256 = vpop.f32.mrb[0].mxu0
    %v257 = vpop.f32.mrb[0].mxu0
    %v258 = vpop.f32.mrb[0].mxu0
    %259 = vdwg.mxu0
    %v260 = vmax.f32 %v255, 0.0
    %v261 = vpack.c.bf16 %v260, %v260
    %v262 = vld [vmem:[#allocation5] sm:$0xf]
    %v263 = vld [vmem:[#allocation5 + $0x4] sm:$0xf]
    %v264 = vld [vmem:[#allocation5 + $0x8] sm:$0xf]
    %v265 = vld [vmem:[#allocation5 + $0xc] sm:$0xf]
    %v266 = vld [vmem:[#allocation5 + $0x10] sm:$0xf]
    %v267 = vld [vmem:[#allocation5 + $0x14] sm:$0xf]
    %v268 = vld [vmem:[#allocation5 + $0x18] sm:$0xf]
    %v269 = vld [vmem:[#allocation5 + $0x1c] sm:$0xf]
    %v270 = vld [vmem:[#allocation5 + $0x20] sm:$0xf]
    %v271 = vld [vmem:[#allocation5 + $0x24] sm:$0xf]
    %v272 = vld [vmem:[#allocation5 + $0x28] sm:$0xf]
    %v273 = vld [vmem:[#allocation5 + $0x2c] sm:$0xf]
    %v274 = vld [vmem:[#allocation5 + $0x30] sm:$0xf]
    %v275 = vld [vmem:[#allocation5 + $0x34] sm:$0xf]
    %v276 = vld [vmem:[#allocation5 + $0x38] sm:$0xf]
    %v277 = vld [vmem:[#allocation5 + $0x3c] sm:$0xf]
    %v278 = vld [vmem:[%s6] sm:$0x1]
    %v280 = vlaneseq
    %v281 = vshrl.u32 %v280, 7
    %v282 = vsub.s32 0, %v281
    %v283 = vrot.slane %v278, %v282
    %v301 = vunpack.c.l.b16 %v262
    %v302 = vunpack.c.l.b16 %v263
    %v303 = vunpack.c.l.b16 %v264
    %v304 = vunpack.c.l.b16 %v265
    %v305 = vunpack.c.l.b16 %v266
    %v306 = vunpack.c.l.b16 %v267
    %v307 = vunpack.c.l.b16 %v268
    %v308 = vunpack.c.l.b16 %v269
    %v309 = vunpack.c.l.b16 %v270
    %v310 = vunpack.c.l.b16 %v271
    %v311 = vunpack.c.l.b16 %v272
    %v312 = vunpack.c.l.b16 %v273
    %v313 = vunpack.c.l.b16 %v274
    %v314 = vunpack.c.l.b16 %v275
    %v315 = vunpack.c.l.b16 %v276
    %v316 = vunpack.c.l.b16 %v277
    %v317 = vpack.c.b16 %v302, %v301
    %v318 = vpack.c.b16 %v304, %v303
    %v319 = vpack.c.b16 %v306, %v305
    %v320 = vpack.c.b16 %v308, %v307
    %v321 = vpack.c.b16 %v310, %v309
    %v322 = vpack.c.b16 %v312, %v311
    %v323 = vpack.c.b16 %v314, %v313
    %v324 = vpack.c.b16 %v316, %v315
    %333 = vmatprep.subr.bf16.mxu0 0
    %334 = vmatpush1.bf16.msra.mxu0 %v317
    %335 = vmatprep.subr.bf16.mxu0 0
    %336 = vmatpush1.bf16.msra.mxu0 %v318
    %337 = vmatprep.subr.bf16.mxu0 0
    %338 = vmatpush1.bf16.msra.mxu0 %v319
    %339 = vmatprep.subr.bf16.mxu0 0
    %340 = vmatpush1.bf16.msra.mxu0 %v320
    %341 = vmatprep.subr.bf16.mxu0 0
    %342 = vmatpush1.bf16.msra.mxu0 %v321
    %343 = vmatprep.subr.bf16.mxu0 0
    %344 = vmatpush1.bf16.msra.mxu0 %v322
    %345 = vmatprep.subr.bf16.mxu0 0
    %346 = vmatpush1.bf16.msra.mxu0 %v323
    %347 = vmatprep.subr.bf16.mxu0 0
    %348 = vmatpush1.bf16.msra.mxu0 %v324
    %349 = vmatprep.subr.bf16.mxu0 0
    %350 = vmatpush1.bf16.msra.mxu0 0
    %351 = vmatprep.subr.bf16.mxu0 0
    %352 = vmatpush1.bf16.msra.mxu0 0
    %353 = vmatprep.subr.bf16.mxu0 0
    %354 = vmatpush1.bf16.msra.mxu0 0
    %355 = vmatprep.subr.bf16.mxu0 0
    %356 = vmatpush1.bf16.msra.mxu0 0
    %357 = vmatprep.subr.bf16.mxu0 0
    %358 = vmatpush1.bf16.msra.mxu0 0
    %359 = vmatprep.subr.bf16.mxu0 0
    %360 = vmatpush1.bf16.msra.mxu0 0
    %361 = vmatprep.subr.bf16.mxu0 0
    %362 = vmatpush1.bf16.msra.mxu0 0
    %363 = vmatprep.subr.bf16.mxu0 0
    %364 = vmatpush1.bf16.msra.mxu0 0
    %365 = vmatprep.mubr.bf16.mxu0 0
    %366 = vmatmul.mubr.bf16.gmra.mrb[0].mxu0 %v261
    %v367 = vpop.f32.mrb[0].mxu0
    %v368 = vadd.f32 %v283, %v367
    %v369 = vpop.f32.mrb[0].mxu0
    %v370 = vpop.f32.mrb[0].mxu0
    %v371 = vpop.f32.mrb[0].mxu0
    %372 = vdwg.mxu0
    %v373 = vmax.f32 %v368, 0.0
    %v374 = vpack.c.bf16 %v373, %v373
    %v375 = vld [vmem:[#allocation7] sm:$0xf]
    %v376 = vld [vmem:[#allocation7 + $0x4] sm:$0xf]
    %v377 = vld [vmem:[#allocation7 + $0x8] sm:$0xf]
    %v378 = vld [vmem:[#allocation7 + $0xc] sm:$0xf]
    %v379 = vld [vmem:[#allocation7 + $0x10] sm:$0xf]
    %v380 = vld [vmem:[#allocation7 + $0x14] sm:$0xf]
    %v381 = vld [vmem:[#allocation7 + $0x18] sm:$0xf]
    %v382 = vld [vmem:[#allocation7 + $0x1c] sm:$0xf]
    %v383 = vld [vmem:[#allocation7 + $0x20] sm:$0xf]
    %v384 = vld [vmem:[#allocation7 + $0x24] sm:$0xf]
    %v385 = vld [vmem:[#allocation7 + $0x28] sm:$0xf]
    %v386 = vld [vmem:[#allocation7 + $0x2c] sm:$0xf]
    %v387 = vld [vmem:[#allocation7 + $0x30] sm:$0xf]
    %v388 = vld [vmem:[#allocation7 + $0x34] sm:$0xf]
    %v389 = vld [vmem:[#allocation7 + $0x38] sm:$0xf]
    %v390 = vld [vmem:[#allocation7 + $0x3c] sm:$0xf]
    %v391 = vld [vmem:[%s9] sm:$0x1]
    %v393 = vlaneseq
    %v394 = vshrl.u32 %v393, 7
    %v395 = vsub.s32 0, %v394
    %v396 = vrot.slane %v391, %v395
    %v414 = vunpack.c.l.b16 %v375
    %v415 = vunpack.c.l.b16 %v376
    %v416 = vunpack.c.l.b16 %v377
    %v417 = vunpack.c.l.b16 %v378
    %v418 = vunpack.c.l.b16 %v379
    %v419 = vunpack.c.l.b16 %v380
    %v420 = vunpack.c.l.b16 %v381
    %v421 = vunpack.c.l.b16 %v382
    %v422 = vunpack.c.l.b16 %v383
    %v423 = vunpack.c.l.b16 %v384
    %v424 = vunpack.c.l.b16 %v385
    %v425 = vunpack.c.l.b16 %v386
    %v426 = vunpack.c.l.b16 %v387
    %v427 = vunpack.c.l.b16 %v388
    %v428 = vunpack.c.l.b16 %v389
    %v429 = vunpack.c.l.b16 %v390
    %v430 = vpack.c.b16 %v415, %v414
    %v431 = vpack.c.b16 %v417, %v416
    %v432 = vpack.c.b16 %v419, %v418
    %v433 = vpack.c.b16 %v421, %v420
    %v434 = vpack.c.b16 %v423, %v422
    %v435 = vpack.c.b16 %v425, %v424
    %v436 = vpack.c.b16 %v427, %v426
    %v437 = vpack.c.b16 %v429, %v428
    %446 = vmatprep.subr.bf16.mxu0 0
    %447 = vmatpush1.bf16.msra.mxu0 %v430
    %448 = vmatprep.subr.bf16.mxu0 0
    %449 = vmatpush1.bf16.msra.mxu0 %v431
    %450 = vmatprep.subr.bf16.mxu0 0
    %451 = vmatpush1.bf16.msra.mxu0 %v432
    %452 = vmatprep.subr.bf16.mxu0 0
    %453 = vmatpush1.bf16.msra.mxu0 %v433
    %454 = vmatprep.subr.bf16.mxu0 0
    %455 = vmatpush1.bf16.msra.mxu0 %v434
    %456 = vmatprep.subr.bf16.mxu0 0
    %457 = vmatpush1.bf16.msra.mxu0 %v435
    %458 = vmatprep.subr.bf16.mxu0 0
    %459 = vmatpush1.bf16.msra.mxu0 %v436
    %460 = vmatprep.subr.bf16.mxu0 0
    %461 = vmatpush1.bf16.msra.mxu0 %v437
    %462 = vmatprep.subr.bf16.mxu0 0
    %463 = vmatpush1.bf16.msra.mxu0 0
    %464 = vmatprep.subr.bf16.mxu0 0
    %465 = vmatpush1.bf16.msra.mxu0 0
    %466 = vmatprep.subr.bf16.mxu0 0
    %467 = vmatpush1.bf16.msra.mxu0 0
    %468 = vmatprep.subr.bf16.mxu0 0
    %469 = vmatpush1.bf16.msra.mxu0 0
    %470 = vmatprep.subr.bf16.mxu0 0
    %471 = vmatpush1.bf16.msra.mxu0 0
    %472 = vmatprep.subr.bf16.mxu0 0
    %473 = vmatpush1.bf16.msra.mxu0 0
    %474 = vmatprep.subr.bf16.mxu0 0
    %475 = vmatpush1.bf16.msra.mxu0 0
    %476 = vmatprep.subr.bf16.mxu0 0
    %477 = vmatpush1.bf16.msra.mxu0 0
    %478 = vmatprep.mubr.bf16.mxu0 0
    %479 = vmatmul.mubr.bf16.gmra.mrb[0].mxu0 %v374
    %v480 = vpop.f32.mrb[0].mxu0
    %v481 = vadd.f32 %v396, %v480
    %v482 = vpop.f32.mrb[0].mxu0
    %v483 = vpop.f32.mrb[0].mxu0
    %v484 = vpop.f32.mrb[0].mxu0
    %485 = vdwg.mxu0
    %v486 = vld [vmem:[%s8] sm:$0x3]
    %v487 = vlaneseq
    %v488 = vshrl.u32 %v487, 7
    %v489 = vsub.s32 0, %v488
    %v490 = vrot.slane %v486, %v489
    %v491 = vmul.f32 %v123, %v490
    %v492 = vadd.f32 %v481, %v491
    %v493 = vlaneseq
    %v494 = vshrl.u32 %v493, 7
    %v495 = vsub.s32 1, %v494
    %v496 = vrot.slane %v486, %v495
    %v497 = vmul.f32 %v139, %v496
    %v498 = vadd.f32 %v492, %v497
    %v499 = vmax.f32 %v498, 0.0
    %v500 = vpack.c.bf16 %v499, %v499
    %v501 = vld [vmem:[#allocation8] sm:$0xf]
    %v502 = vld [vmem:[#allocation8 + $0x4] sm:$0xf]
    %v503 = vld [vmem:[#allocation8 + $0x8] sm:$0xf]
    %v504 = vld [vmem:[#allocation8 + $0xc] sm:$0xf]
    %v505 = vld [vmem:[#allocation8 + $0x10] sm:$0xf]
    %v506 = vld [vmem:[#allocation8 + $0x14] sm:$0xf]
    %v507 = vld [vmem:[#allocation8 + $0x18] sm:$0xf]
    %v508 = vld [vmem:[#allocation8 + $0x1c] sm:$0xf]
    %v509 = vld [vmem:[#allocation8 + $0x20] sm:$0xf]
    %v510 = vld [vmem:[#allocation8 + $0x24] sm:$0xf]
    %v511 = vld [vmem:[#allocation8 + $0x28] sm:$0xf]
    %v512 = vld [vmem:[#allocation8 + $0x2c] sm:$0xf]
    %v513 = vld [vmem:[#allocation8 + $0x30] sm:$0xf]
    %v514 = vld [vmem:[#allocation8 + $0x34] sm:$0xf]
    %v515 = vld [vmem:[#allocation8 + $0x38] sm:$0xf]
    %v516 = vld [vmem:[#allocation8 + $0x3c] sm:$0xf]
    %v517 = vld [vmem:[%s11] sm:$0x1]
    %v519 = vlaneseq
    %v520 = vshrl.u32 %v519, 7
    %v521 = vsub.s32 0, %v520
    %v522 = vrot.slane %v517, %v521
    %v540 = vunpack.c.l.b16 %v501
    %v541 = vunpack.c.l.b16 %v502
    %v542 = vunpack.c.l.b16 %v503
    %v543 = vunpack.c.l.b16 %v504
    %v544 = vunpack.c.l.b16 %v505
    %v545 = vunpack.c.l.b16 %v506
    %v546 = vunpack.c.l.b16 %v507
    %v547 = vunpack.c.l.b16 %v508
    %v548 = vunpack.c.l.b16 %v509
    %v549 = vunpack.c.l.b16 %v510
    %v550 = vunpack.c.l.b16 %v511
    %v551 = vunpack.c.l.b16 %v512
    %v552 = vunpack.c.l.b16 %v513
    %v553 = vunpack.c.l.b16 %v514
    %v554 = vunpack.c.l.b16 %v515
    %v555 = vunpack.c.l.b16 %v516
    %v556 = vpack.c.b16 %v541, %v540
    %v557 = vpack.c.b16 %v543, %v542
    %v558 = vpack.c.b16 %v545, %v544
    %v559 = vpack.c.b16 %v547, %v546
    %v560 = vpack.c.b16 %v549, %v548
    %v561 = vpack.c.b16 %v551, %v550
    %v562 = vpack.c.b16 %v553, %v552
    %v563 = vpack.c.b16 %v555, %v554
    %572 = vmatprep.subr.bf16.mxu0 0
    %573 = vmatpush1.bf16.msra.mxu0 %v556
    %574 = vmatprep.subr.bf16.mxu0 0
    %575 = vmatpush1.bf16.msra.mxu0 %v557
    %576 = vmatprep.subr.bf16.mxu0 0
    %577 = vmatpush1.bf16.msra.mxu0 %v558
    %578 = vmatprep.subr.bf16.mxu0 0
    %579 = vmatpush1.bf16.msra.mxu0 %v559
    %580 = vmatprep.subr.bf16.mxu0 0
    %581 = vmatpush1.bf16.msra.mxu0 %v560
    %582 = vmatprep.subr.bf16.mxu0 0
    %583 = vmatpush1.bf16.msra.mxu0 %v561
    %584 = vmatprep.subr.bf16.mxu0 0
    %585 = vmatpush1.bf16.msra.mxu0 %v562
    %586 = vmatprep.subr.bf16.mxu0 0
    %587 = vmatpush1.bf16.msra.mxu0 %v563
    %588 = vmatprep.subr.bf16.mxu0 0
    %589 = vmatpush1.bf16.msra.mxu0 0
    %590 = vmatprep.subr.bf16.mxu0 0
    %591 = vmatpush1.bf16.msra.mxu0 0
    %592 = vmatprep.subr.bf16.mxu0 0
    %593 = vmatpush1.bf16.msra.mxu0 0
    %594 = vmatprep.subr.bf16.mxu0 0
    %595 = vmatpush1.bf16.msra.mxu0 0
    %596 = vmatprep.subr.bf16.mxu0 0
    %597 = vmatpush1.bf16.msra.mxu0 0
    %598 = vmatprep.subr.bf16.mxu0 0
    %599 = vmatpush1.bf16.msra.mxu0 0
    %600 = vmatprep.subr.bf16.mxu0 0
    %601 = vmatpush1.bf16.msra.mxu0 0
    %602 = vmatprep.subr.bf16.mxu0 0
    %603 = vmatpush1.bf16.msra.mxu0 0
    %604 = vmatprep.mubr.bf16.mxu0 0
    %605 = vmatmul.mubr.bf16.gmra.mrb[0].mxu0 %v500
    %v606 = vpop.f32.mrb[0].mxu0
    %v607 = vadd.f32 %v522, %v606
    %v608 = vpop.f32.mrb[0].mxu0
    %v609 = vpop.f32.mrb[0].mxu0
    %v610 = vpop.f32.mrb[0].mxu0
    %611 = vdwg.mxu0
    %v612 = vmax.f32 %v607, 0.0
    %v613 = vpack.c.bf16 %v612, %v612
    %v614 = vld [vmem:[#allocation10] sm:$0xf]
    %v615 = vld [vmem:[#allocation10 + $0x4] sm:$0xf]
    %v616 = vld [vmem:[#allocation10 + $0x8] sm:$0xf]
    %v617 = vld [vmem:[#allocation10 + $0xc] sm:$0xf]
    %v618 = vld [vmem:[#allocation10 + $0x10] sm:$0xf]
    %v619 = vld [vmem:[#allocation10 + $0x14] sm:$0xf]
    %v620 = vld [vmem:[#allocation10 + $0x18] sm:$0xf]
    %v621 = vld [vmem:[#allocation10 + $0x1c] sm:$0xf]
    %v622 = vld [vmem:[#allocation10 + $0x20] sm:$0xf]
    %v623 = vld [vmem:[#allocation10 + $0x24] sm:$0xf]
    %v624 = vld [vmem:[#allocation10 + $0x28] sm:$0xf]
    %v625 = vld [vmem:[#allocation10 + $0x2c] sm:$0xf]
    %v626 = vld [vmem:[#allocation10 + $0x30] sm:$0xf]
    %v627 = vld [vmem:[#allocation10 + $0x34] sm:$0xf]
    %v628 = vld [vmem:[#allocation10 + $0x38] sm:$0xf]
    %v629 = vld [vmem:[#allocation10 + $0x3c] sm:$0xf]
    %v630 = vld [vmem:[%s13] sm:$0x1]
    %v632 = vlaneseq
    %v633 = vshrl.u32 %v632, 7
    %v634 = vsub.s32 0, %v633
    %v635 = vrot.slane %v630, %v634
    %v653 = vunpack.c.l.b16 %v614
    %v654 = vunpack.c.l.b16 %v615
    %v655 = vunpack.c.l.b16 %v616
    %v656 = vunpack.c.l.b16 %v617
    %v657 = vunpack.c.l.b16 %v618
    %v658 = vunpack.c.l.b16 %v619
    %v659 = vunpack.c.l.b16 %v620
    %v660 = vunpack.c.l.b16 %v621
    %v661 = vunpack.c.l.b16 %v622
    %v662 = vunpack.c.l.b16 %v623
    %v663 = vunpack.c.l.b16 %v624
    %v664 = vunpack.c.l.b16 %v625
    %v665 = vunpack.c.l.b16 %v626
    %v666 = vunpack.c.l.b16 %v627
    %v667 = vunpack.c.l.b16 %v628
    %v668 = vunpack.c.l.b16 %v629
    %v669 = vpack.c.b16 %v654, %v653
    %v670 = vpack.c.b16 %v656, %v655
    %v671 = vpack.c.b16 %v658, %v657
    %v672 = vpack.c.b16 %v660, %v659
    %v673 = vpack.c.b16 %v662, %v661
    %v674 = vpack.c.b16 %v664, %v663
    %v675 = vpack.c.b16 %v666, %v665
    %v676 = vpack.c.b16 %v668, %v667
    %685 = vmatprep.subr.bf16.mxu0 0
    %686 = vmatpush1.bf16.msra.mxu0 %v669
    %687 = vmatprep.subr.bf16.mxu0 0
    %688 = vmatpush1.bf16.msra.mxu0 %v670
    %689 = vmatprep.subr.bf16.mxu0 0
    %690 = vmatpush1.bf16.msra.mxu0 %v671
    %691 = vmatprep.subr.bf16.mxu0 0
    %692 = vmatpush1.bf16.msra.mxu0 %v672
    %693 = vmatprep.subr.bf16.mxu0 0
    %694 = vmatpush1.bf16.msra.mxu0 %v673
    %695 = vmatprep.subr.bf16.mxu0 0
    %696 = vmatpush1.bf16.msra.mxu0 %v674
    %697 = vmatprep.subr.bf16.mxu0 0
    %698 = vmatpush1.bf16.msra.mxu0 %v675
    %699 = vmatprep.subr.bf16.mxu0 0
    %700 = vmatpush1.bf16.msra.mxu0 %v676
    %701 = vmatprep.subr.bf16.mxu0 0
    %702 = vmatpush1.bf16.msra.mxu0 0
    %703 = vmatprep.subr.bf16.mxu0 0
    %704 = vmatpush1.bf16.msra.mxu0 0
    %705 = vmatprep.subr.bf16.mxu0 0
    %706 = vmatpush1.bf16.msra.mxu0 0
    %707 = vmatprep.subr.bf16.mxu0 0
    %708 = vmatpush1.bf16.msra.mxu0 0
    %709 = vmatprep.subr.bf16.mxu0 0
    %710 = vmatpush1.bf16.msra.mxu0 0
    %711 = vmatprep.subr.bf16.mxu0 0
    %712 = vmatpush1.bf16.msra.mxu0 0
    %713 = vmatprep.subr.bf16.mxu0 0
    %714 = vmatpush1.bf16.msra.mxu0 0
    %715 = vmatprep.subr.bf16.mxu0 0
    %716 = vmatpush1.bf16.msra.mxu0 0
    %717 = vmatprep.mubr.bf16.mxu0 0
    %718 = vmatmul.mubr.bf16.gmra.mrb[0].mxu0 %v613
    %v719 = vpop.f32.mrb[0].mxu0
    %v720 = vadd.f32 %v635, %v719
    %v721 = vpop.f32.mrb[0].mxu0
    %v722 = vpop.f32.mrb[0].mxu0
    %v723 = vpop.f32.mrb[0].mxu0
    %724 = vdwg.mxu0
    %v725 = vmax.f32 %v720, 0.0
    %726 = vst [vmem:[#allocation11] sm:$0xff] %v725
    // Predicated region
    $region78: #{_forward.1} parent=1 // pred_check
      _
    $region79: #{_forward.1} parent=1 // pred_check_branch
      %728 = sbr.rel (0) target = $region81
    $region80: #{_forward.1} parent=1 // pred_region
      %s730 = ssub.s32 128, 128
      %731 = vsyncadd [#allocation4], %s730
      %s733 = sshll.u32 [#allocation11], 4
      %s734 = int_to_ptr.vmem [resolvable:$true] %s733
      %736 = dma.vmem_to_hbm [thread:$0]  %s734, 128, %s14, [#allocation4]
    $region81: #{_forward.1} parent=1 // pred_fallthru
      _
    // Predicated region
    $region82: #{_forward.1} parent=1 // pred_check
      _
    $region83: #{_forward.1} parent=1 // pred_check_branch
      %738 = sbr.rel (0) target = $region85
    $region84: #{_forward.1} parent=1 // pred_region
      %739 = dma.done [#allocation4], 128
    $region85: #{_forward.1} parent=1 // pred_fallthru
      _
    %740 = vsyncpa [#allocation3], 1
    %741 = vsyncpa [#allocation6], 1
    %742 = vsyncpa [#allocation9], 1
    %743 = vsyncpa [#allocation4], 1

</llo_original>
